<compile_context>
chip_gen: v7x
topology: tpu7x:2x2x1
jax: 0.10.0
libtpu: 0.0.40
codegen_flags: <defaults>
</compile_context>

<pallas_src>
import jax
import jax.numpy as jnp
from jax.experimental import pallas as pl
from jax.experimental.pallas import tpu as pltpu


def _round_up(x, m):
    return ((x + m - 1) // m) * m


def _gmm_kernel(x_ref, minv_ref, c_ref, a_ref, sel_ref, bias_ref, logrho_ref):
    # x_ref      : (2, TB, D)      [0] = posterior loc, [1] = posterior scale
    # minv_ref   : (D, KD_pad)     minv_flat[j, k*D+i] = (L_k^{-1})[i, j]   (zero-padded lanes)
    # c_ref      : (1, KD_pad)     c[k*D+i] = (L_k^{-1} mu_p[k])[i]         (zero-padded lanes)
    # a_ref      : (D, K_pad)      -0.5 * diag(Sigma_k^{-1})[j]             (zero-padded lanes)
    # sel_ref    : (KD_pad, K_pad) -0.5 * class selector (sums D entries of class k)
    # bias_ref   : (1, K_pad)      D/2 - sum_i log (L_k)[i, i]
    # logrho_ref : (TB, K)         slim output, K = true class count
    k = logrho_ref.shape[-1]
    mu = x_ref[0]
    sq = x_ref[1]

    # -0.5 * tr(Sigma_k^{-1} diag(sq^2))                      -> (TB, K_pad)
    r = jnp.dot(sq * sq, a_ref[...], preferred_element_type=jnp.float32)

    # -0.5 * || L_k^{-1} (mu_p[k] - mu_q[b]) ||^2             -> (TB, K_pad)
    # TODO(synk): for non-toy K (K*D, K_pad large) this selector matmul and the
    # per-class constants should be tiled over a second (class) grid axis instead
    # of being kept whole in VMEM (v7x has only 64 MiB); at K=3, D=10 it is negligible.
    y = c_ref[...] - jnp.dot(mu, minv_ref[...], preferred_element_type=jnp.float32)
    r = r + jnp.dot(y * y, sel_ref[...], preferred_element_type=jnp.float32)

    # + log det diag(sq)  +  (D/2 - log det L_k)   ->  log_rho = -KL
    r = r + jnp.sum(jnp.log(sq), axis=-1, keepdims=True) + bias_ref[...]

    # store only the K real class lanes (masked vst in VMEM, but the HBM write is
    # a contiguous TB*K*4-byte chunk).
    logrho_ref[...] = r[:, :k]


def _pick_tb(B, cap=4096):
    """Batch tile: multiple of 8, >= 4 grid steps when B allows (2 per v7x TC), capped."""
    b8 = _round_up(B, 8)
    quarter = _round_up(pl.cdiv(b8, 4), 8)
    return max(8, min(cap, quarter))


def _lane_bytes(cols):
    return _round_up(max(int(cols), 1), 128) * 4


def gmm_forward(qz_loc, qz_scale, locs, scale_tril, log_weights, *, tb=None):
    """Pallas GMM forward. Returns (log_class_posterior, log_rho), each (B, K)."""
    f32 = jnp.float32
    qz_loc = qz_loc.astype(f32)
    qz_scale = qz_scale.astype(f32)
    locs = locs.astype(f32)
    scale_tril = scale_tril.astype(f32)
    B, D = qz_loc.shape
    K = locs.shape[0]
    KD = K * D

    K_pad = _round_up(K, 128)     # lane-dense per-class constants (in-kernel only)
    KD_pad = _round_up(KD, 128)   # lane-dense Mahalanobis intermediate

    # --- parameter preprocessing (glue, plain JAX) ---
    # TODO(synk): the triangular inverse of scale_tril (parameter-only preprocessing,
    # K tiny DxD solves) has no clean Pallas equivalent and stays in plain JAX.
    eye = jnp.eye(D, dtype=f32)
    minv = jax.vmap(
        lambda L: jax.scipy.linalg.solve_triangular(L, eye, lower=True)
    )(scale_tril)                                                    # (K, D, D) = L_k^{-1}
    a_nh = -0.5 * jnp.sum(minv * minv, axis=1).T                     # (D, K)
    a_nh = jnp.pad(a_nh, ((0, 0), (0, K_pad - K)))
    c_flat = jnp.einsum('kij,kj->ki', minv, locs).reshape(1, KD)     # (1, K*D)
    c_flat = jnp.pad(c_flat, ((0, 0), (0, KD_pad - KD)))
    minv_flat = jnp.transpose(minv, (2, 0, 1)).reshape(D, KD)        # (D, K*D)
    minv_flat = jnp.pad(minv_flat, ((0, 0), (0, KD_pad - KD)))
    sel_nh = -0.5 * jnp.repeat(jnp.eye(K, dtype=f32), D, axis=0)     # (K*D, K)
    sel_nh = jnp.pad(sel_nh, ((0, KD_pad - KD), (0, K_pad - K)))
    logdet_p = jnp.sum(
        jnp.log(jnp.diagonal(scale_tril, axis1=-2, axis2=-1)), axis=-1)   # (K,)
    bias = (0.5 * D - logdet_p).reshape(1, K)
    bias = jnp.pad(bias, ((0, 0), (0, K_pad - K)))

    # --- pad batch to a multiple of the batch tile, stack loc/scale into one input ---
    tb_eff = _pick_tb(B) if tb is None else tb
    B_pad = _round_up(B, tb_eff)
    pad = B_pad - B
    mu_p = jnp.pad(qz_loc, ((0, pad), (0, 0)))
    sq_p = jnp.pad(qz_scale, ((0, pad), (0, 0)), constant_values=1.0)  # keep log() finite
    x = jnp.stack([mu_p, sq_p], axis=0)                                # (2, B_pad, D)

    grid = (B_pad // tb_eff,)
    const_spec = lambda shape: pl.BlockSpec(shape, lambda i: (0, 0))

    # VMEM budget derived from the actual (lane-padded) tile set, clamped to 48 MiB
    # so it fits v7x's 64 MiB physical VMEM (v5e/v6e have 128 MiB).
    io_bytes = 2 * (2 * tb_eff * _lane_bytes(D))            # stacked input, double-buffered
    io_bytes += 2 * (tb_eff * _lane_bytes(K))                # slim log_rho output, double-buffered
    io_bytes += 2 * (_round_up(D, 8) * _lane_bytes(KD_pad)   # constants
                     + 8 * _lane_bytes(KD_pad)
                     + _round_up(D, 8) * _lane_bytes(K_pad)
                     + _round_up(KD_pad, 8) * _lane_bytes(K_pad)
                     + 8 * _lane_bytes(K_pad))
    tmp_bytes = 10 * tb_eff * _lane_bytes(KD_pad)            # headroom for in-kernel f32 temporaries
    vmem_limit = int(min(48 << 20, max(32 << 20, io_bytes + tmp_bytes + (4 << 20))))

    cost = pl.CostEstimate(
        flops=int(2 * B_pad * D * KD + 2 * B_pad * KD * K + 2 * B_pad * D * K
                  + 6 * B_pad * KD),
        transcendentals=int(B_pad * D),
        bytes_accessed=int(B_pad * (2 * D + K) * 4
                           + (D * KD_pad + KD_pad + D * K_pad + KD_pad * K_pad + K_pad) * 4),
    )

    log_rho_pad = pl.pallas_call(
        _gmm_kernel,
        grid=grid,
        in_specs=[
            pl.BlockSpec((2, tb_eff, D), lambda i: (0, i, 0)),
            const_spec((D, KD_pad)), const_spec((1, KD_pad)),
            const_spec((D, K_pad)), const_spec((KD_pad, K_pad)),
            const_spec((1, K_pad)),
        ],
        out_specs=pl.BlockSpec((tb_eff, K), lambda i: (i, 0)),
        out_shape=jax.ShapeDtypeStruct((B_pad, K), f32),
        compiler_params=pltpu.CompilerParams(
            dimension_semantics=("parallel",),
            vmem_limit_bytes=vmem_limit,
        ),
        cost_estimate=cost,
    )(x, minv_flat, c_flat, a_nh, sel_nh, bias)

    log_rho = log_rho_pad[:B]

    # K-wide class posterior in the wrapper (K is tiny; keeps the kernel output slim).
    lcp = jnp.maximum(jax.nn.log_softmax(log_weights.astype(f32)), -20.0)
    log_post = jax.nn.log_softmax(lcp[None, :] + log_rho, axis=-1)
    return log_post, log_rho


def gmm_forward_reference(qz_loc, qz_scale, locs, scale_tril, log_weights):
    """Pure-JAX reference (independent closed-form KL) for validation."""
    B, D = qz_loc.shape
    sigma = jnp.einsum('kij,klj->kil', scale_tril, scale_tril)      # L L^T
    sigma_inv = jnp.linalg.inv(sigma)
    diag_inv = jnp.diagonal(sigma_inv, axis1=-2, axis2=-1)          # (K, D)
    tr = (qz_scale ** 2) @ diag_inv.T                               # (B, K)
    diff = locs[None, :, :] - qz_loc[:, None, :]                    # (B, K, D)
    maha = jnp.einsum('bkd,kde,bke->bk', diff, sigma_inv, diff)
    logdet_p = 2.0 * jnp.sum(
        jnp.log(jnp.diagonal(scale_tril, axis1=-2, axis2=-1)), -1)  # (K,)
    logdet_q = 2.0 * jnp.sum(jnp.log(qz_scale), -1)                 # (B,)
    kl = 0.5 * (tr + maha - D + logdet_p[None, :] - logdet_q[:, None])
    log_rho = -kl
    lcp = jnp.maximum(jax.nn.log_softmax(log_weights), -20.0)
    logpost = jax.nn.log_softmax(lcp[None, :] + log_rho, axis=-1)
    return logpost, log_rho


if __name__ == "__main__":
    # GMM(feature_size=10, num_classes=3, covariance_type='full'),
    # qz = Normal(loc (8, 10), scale (8, 10))  — matches the module docstring.
    feature_size, num_classes, batch = 10, 3, 8

    key = jax.random.PRNGKey(0)
    k_locs, k_mu, k_sc = jax.random.split(key, 3)

    # Deterministic parameter init mirroring GMM.__init__ (covariance_type='full').
    locs = 1.0 * jax.random.normal(k_locs, (num_classes, feature_size), jnp.float32)
    log_weights = jnp.log(jnp.full((num_classes,), 1.0 / num_classes, jnp.float32))
    scales = jnp.broadcast_to(
        jnp.eye(feature_size, dtype=jnp.float32),
        (num_classes, feature_size, feature_size))
    tril_mask = jnp.tril(jnp.ones((feature_size, feature_size), jnp.float32))
    scale_tril = scales * tril_mask + 0.1 * jnp.eye(feature_size, dtype=jnp.float32)

    # Posterior qz (loc, scale) — scale strictly positive.
    qz_loc = jax.random.normal(k_mu, (batch, feature_size), jnp.float32)
    qz_scale = 0.5 + jax.random.uniform(k_sc, (batch, feature_size), jnp.float32)

    log_post, log_rho = jax.jit(gmm_forward, static_argnames=("tb",))(
        qz_loc, qz_scale, locs, scale_tril, log_weights)
    jax.block_until_ready((log_post, log_rho))

    ref_post, ref_rho = gmm_forward_reference(
        qz_loc, qz_scale, locs, scale_tril, log_weights)
    assert log_post.shape == (batch, num_classes)
    assert log_rho.shape == (batch, num_classes)
    assert jnp.allclose(log_rho, ref_rho, rtol=1e-4, atol=1e-4), "log_rho mismatch"
    assert jnp.allclose(log_post, ref_post, rtol=1e-4, atol=1e-4), "posterior mismatch"

    print("KERNEL_OK")
</pallas_src>

<mosaic_0001>
module attributes {stable_mosaic.version = 11 : i64} {
  func.func @_gmm_kernel(%arg0: i32, %arg1: memref<2x8x10xf32, #tpu.memory_space<vmem>>, %arg2: memref<10x128xf32, #tpu.memory_space<vmem>>, %arg3: memref<1x128xf32, #tpu.memory_space<vmem>>, %arg4: memref<10x128xf32, #tpu.memory_space<vmem>>, %arg5: memref<128x128xf32, #tpu.memory_space<vmem>>, %arg6: memref<1x128xf32, #tpu.memory_space<vmem>>, %arg7: memref<8x3xf32, #tpu.memory_space<vmem>>) attributes {dimension_semantics = [#tpu.dimension_semantics<parallel>], iteration_bounds = array<i64: 1>, scalar_prefetch = 0 : i64, scratch_operands = 0 : i64, tpu.core_type = #tpu.core_type<tc>, window_params = [{transform_indices = @transform_0, window_bounds = array<i64: 2, 8, 10>}, {pipeline_mode = #tpu.pipeline_mode<synchronous>, transform_indices = @transform_1, window_bounds = array<i64: 10, 128>}, {pipeline_mode = #tpu.pipeline_mode<synchronous>, transform_indices = @transform_2, window_bounds = array<i64: 1, 128>}, {pipeline_mode = #tpu.pipeline_mode<synchronous>, transform_indices = @transform_3, window_bounds = array<i64: 10, 128>}, {pipeline_mode = #tpu.pipeline_mode<synchronous>, transform_indices = @transform_4, window_bounds = array<i64: 128, 128>}, {pipeline_mode = #tpu.pipeline_mode<synchronous>, transform_indices = @transform_5, window_bounds = array<i64: 1, 128>}, {transform_indices = @transform_6, window_bounds = array<i64: 8, 3>}]} {
    %c0 = arith.constant 0 : index
    %c0_0 = arith.constant 0 : index
    %c0_1 = arith.constant 0 : index
    %0 = vector.load %arg1[%c0, %c0_0, %c0_1] : memref<2x8x10xf32, #tpu.memory_space<vmem>>, vector<1x8x10xf32>
    %1 = vector.shape_cast %0 : vector<1x8x10xf32> to vector<8x10xf32>
    %c1 = arith.constant 1 : index
    %c0_2 = arith.constant 0 : index
    %c0_3 = arith.constant 0 : index
    %2 = vector.load %arg1[%c1, %c0_2, %c0_3] : memref<2x8x10xf32, #tpu.memory_space<vmem>>, vector<1x8x10xf32>
    %3 = vector.shape_cast %2 : vector<1x8x10xf32> to vector<8x10xf32>
    %4 = arith.mulf %3, %3 : vector<8x10xf32>
    %c0_4 = arith.constant 0 : index
    %c0_5 = arith.constant 0 : index
    %5 = vector.load %arg4[%c0_4, %c0_5] : memref<10x128xf32, #tpu.memory_space<vmem>>, vector<10x128xf32>
    %cst = arith.constant dense<0.000000e+00> : vector<8x128xf32>
    %6 = tpu.matmul %4, %5, %cst {dimension_numbers = #tpu.dot_dimension_numbers<[1], [0], [0], [1], [0, 0, 1, 1], [], []>} : vector<8x10xf32>, vector<10x128xf32>, vector<8x128xf32> -> vector<8x128xf32>
    %c0_6 = arith.constant 0 : index
    %c0_7 = arith.constant 0 : index
    %7 = vector.load %arg3[%c0_6, %c0_7] : memref<1x128xf32, #tpu.memory_space<vmem>>, vector<1x128xf32>
    %c0_8 = arith.constant 0 : index
    %c0_9 = arith.constant 0 : index
    %8 = vector.load %arg2[%c0_8, %c0_9] : memref<10x128xf32, #tpu.memory_space<vmem>>, vector<10x128xf32>
    %cst_10 = arith.constant dense<0.000000e+00> : vector<8x128xf32>
    %9 = tpu.matmul %1, %8, %cst_10 {dimension_numbers = #tpu.dot_dimension_numbers<[1], [0], [0], [1], [0, 0, 1, 1], [], []>} : vector<8x10xf32>, vector<10x128xf32>, vector<8x128xf32> -> vector<8x128xf32>
    %10 = vector.broadcast %7 : vector<1x128xf32> to vector<8x128xf32>
    %11 = arith.subf %10, %9 : vector<8x128xf32>
    %12 = arith.mulf %11, %11 : vector<8x128xf32>
    %c0_11 = arith.constant 0 : index
    %c0_12 = arith.constant 0 : index
    %13 = vector.load %arg5[%c0_11, %c0_12] : memref<128x128xf32, #tpu.memory_space<vmem>>, vector<128x128xf32>
    %cst_13 = arith.constant dense<0.000000e+00> : vector<8x128xf32>
    %14 = tpu.matmul %12, %13, %cst_13 {dimension_numbers = #tpu.dot_dimension_numbers<[1], [0], [0], [1], [0, 0, 1, 1], [], []>} : vector<8x128xf32>, vector<128x128xf32>, vector<8x128xf32> -> vector<8x128xf32>
    %15 = arith.addf %6, %14 : vector<8x128xf32>
    %16 = math.log %3 : vector<8x10xf32>
    %cst_14 = arith.constant dense<0.000000e+00> : vector<8xf32>
    %17 = vector.multi_reduction <add>, %16, %cst_14 [1] : vector<8x10xf32> to vector<8xf32>
    %18 = vector.shape_cast %17 : vector<8xf32> to vector<8x1xf32>
    %19 = vector.broadcast %18 : vector<8x1xf32> to vector<8x128xf32>
    %20 = arith.addf %15, %19 : vector<8x128xf32>
    %c0_15 = arith.constant 0 : index
    %c0_16 = arith.constant 0 : index
    %21 = vector.load %arg6[%c0_15, %c0_16] : memref<1x128xf32, #tpu.memory_space<vmem>>, vector<1x128xf32>
    %22 = vector.broadcast %21 : vector<1x128xf32> to vector<8x128xf32>
    %23 = arith.addf %20, %22 : vector<8x128xf32>
    %24 = vector.extract_strided_slice %23 {offsets = [0, 0], sizes = [8, 3], strides = [1, 1]} : vector<8x128xf32> to vector<8x3xf32>
    %c0_17 = arith.constant 0 : index
    %c0_18 = arith.constant 0 : index
    %25 = vector.load %arg7[%c0_17, %c0_18] : memref<8x3xf32, #tpu.memory_space<vmem>>, vector<8x3xf32>
    tpu.vector_store %arg7[%c0_17, %c0_18], %24 {strides = array<i32>} : memref<8x3xf32, #tpu.memory_space<vmem>>, vector<8x3xf32>,
    return
  }
  func.func @transform_0(%arg0: i32) -> (i32, i32, i32) {
    %c0_i32 = arith.constant 0 : i32
    %c0_i32_0 = arith.constant 0 : i32
    %c0_i32_1 = arith.constant 0 : i32
    return %c0_i32, %arg0, %c0_i32_0 : i32, i32, i32
  }
  func.func @transform_1(%arg0: i32) -> (i32, i32) {
    %c0_i32 = arith.constant 0 : i32
    %c0_i32_0 = arith.constant 0 : i32
    %c0_i32_1 = arith.constant 0 : i32
    return %c0_i32, %c0_i32_0 : i32, i32
  }
  func.func @transform_2(%arg0: i32) -> (i32, i32) {
    %c0_i32 = arith.constant 0 : i32
    %c0_i32_0 = arith.constant 0 : i32
    %c0_i32_1 = arith.constant 0 : i32
    return %c0_i32, %c0_i32_0 : i32, i32
  }
  func.func @transform_3(%arg0: i32) -> (i32, i32) {
    %c0_i32 = arith.constant 0 : i32
    %c0_i32_0 = arith.constant 0 : i32
    %c0_i32_1 = arith.constant 0 : i32
    return %c0_i32, %c0_i32_0 : i32, i32
  }
  func.func @transform_4(%arg0: i32) -> (i32, i32) {
    %c0_i32 = arith.constant 0 : i32
    %c0_i32_0 = arith.constant 0 : i32
    %c0_i32_1 = arith.constant 0 : i32
    return %c0_i32, %c0_i32_0 : i32, i32
  }
  func.func @transform_5(%arg0: i32) -> (i32, i32) {
    %c0_i32 = arith.constant 0 : i32
    %c0_i32_0 = arith.constant 0 : i32
    %c0_i32_1 = arith.constant 0 : i32
    return %c0_i32, %c0_i32_0 : i32, i32
  }
  func.func @transform_6(%arg0: i32) -> (i32, i32) {
    %c0_i32 = arith.constant 0 : i32
    %c0_i32_0 = arith.constant 0 : i32
    return %arg0, %c0_i32 : i32, i32
  }
}

</mosaic_0001>

<llo_original>
// kernel: custom-call.2
$region0: #{custom-call.2}
  %s0 = inlined_call_operand.vmem [shape: f32[3,1,10,10], index: 0, kind: input, shape index: {}]
  %s1 = inlined_call_operand.vmem [shape: f32[3,1,10,10], index: 1, kind: output, shape index: {}]
  $region1: #{custom-call.2} parent=0
    #allocation0 [shape = 'u8[16384]{0}', space=vmem, size = 0x4000, scoped, tag = 'operand span for operand 0']
    #allocation1 [shape = 'u8[16384]{0}', space=vmem, size = 0x4000, scoped, tag = 'operand span for operand 1']
    loop: start=0, step=1, limit=5
    $region2: #{custom-call.2} parent=1 // loop_pre_header
      _
    $region3: #{custom-call.2} parent=1 // loop_header
      %s3 = sphi 0, %s7
      %p4 = scmp.ge.s32.totalorder %s3, 5
      %s10 = sphi 0, %s36
      %s11 = sphi 0, %s32
      %s12 = sphi 0, %s28
      %s13 = sphi 0, %s24
      %s14 = sphi 0, %s10
      %s15 = sphi 0, %s11
      %s16 = sphi 0, %s12
      %s17 = sphi 0, %s13
      %s18 = sphi 0, %s14
      %s19 = sphi 0, %s15
      %s20 = sphi 0, %s16
      %s21 = sphi 0, %s17
    $region4: #{custom-call.2} parent=1 // loop_header_branch
      %6 = sbr.rel (%p4) target = $region8
    $region5: #{custom-call.2} parent=1 // loop_body
      %s8 = ssub.s32 %s3, 1
      %s9 = ssub.s32 %s3, 2
      %s22 = sadd.s32 1, %s13
      %p23 = scmp.ge.s32.totalorder %s22, 1
      %s24 = scalar_select %p23, 0, %s22
      %s25 = sadd.s32 1, %s12
      %s26 = scalar_select %p23, %s25, %s12
      %p27 = scmp.ge.s32.totalorder %s26, 1
      %s28 = scalar_select %p27, 0, %s26
      %s29 = sadd.s32 1, %s11
      %s30 = scalar_select %p27, %s29, %s11
      %p31 = scmp.ge.s32.totalorder %s30, 1
      %s32 = scalar_select %p31, 0, %s30
      %s33 = sadd.s32 1, %s10
      %s34 = scalar_select %p31, %s33, %s10
      %p35 = scmp.ge.s32.totalorder %s34, 3
      %s36 = scalar_select %p35, 0, %s34
      %p37 = scmp.le.s32.totalorder 1, %s3
      %p38 = scmp.lt.s32.totalorder %s3, 4
      %p39 = pnand %p37, %p38
      %p40 = pneg %p39
      // Predicated region
      $region9: #{custom-call.2} parent=5 // pred_check
        _
      $region10: #{custom-call.2} parent=5 // pred_check_branch
        %42 = sbr.rel (%p39) target = $region12
      $region11: #{custom-call.2} parent=5 // pred_region
        %s43 = ssub.s32 %s3, 1
      $region12: #{custom-call.2} parent=5 // pred_fallthru
        _
      %p44 = scmp.lt.s32.totalorder %s3, 3
      // Predicated region
      $region13: #{custom-call.2} parent=5 // pred_check
        %p45 = pneg %p44
      $region14: #{custom-call.2} parent=5 // pred_check_branch
        %47 = sbr.rel (%p45) target = $region16
      $region15: #{custom-call.2} parent=5 // pred_region
        %s48 = sand.u32 %s3, 1
        %s49 = sand.u32 %s3, 1
        %s50 = smul.addr %s49, 16
        %s51 = scalar_lea.vmem [#allocation0], %s50
        %s52 = sadd.s32 %s13, %s12
        %s53 = smul.addr %s11, 2
        %s54 = sadd.s32 %s52, %s53
        %s55 = smul.addr %s10, 2
        %s56 = sadd.s32 %s54, %s55
        %s57 = smul.addr %s56, 8
        %s58 = scalar_lea.vmem %s0, %s57
        // Predicated region
        $region17: #{custom-call.2} parent=15 // pred_check
          _
        $region18: #{custom-call.2} parent=15 // pred_check_branch
          %60 = sbr.rel (0) target = $region20
        $region19: #{custom-call.2} parent=15 // pred_region
          // Predicated region
          $region21: #{custom-call.2} parent=19 // pred_check
            _
          $region22: #{custom-call.2} parent=19 // pred_check_branch
            %62 = sbr.rel (0) target = $region24
          $region23: #{custom-call.2} parent=19 // pred_region
            // Predicated region
            $region36: #{custom-call.2} parent=23 // pred_check
              _
            $region37: #{custom-call.2} parent=23 // pred_check_branch
              %79 = sbr.rel (0) target = $region39
            $region38: #{custom-call.2} parent=23 // pred_region
              loop: start=0, step=1, limit=1
              $region40: #{custom-call.2} parent=38 // loop_pre_header
                _
              $region41: #{custom-call.2} parent=38 // loop_header
                %s81 = sphi 0, %s85
                %p82 = scmp.ge.s32.totalorder %s81, 1
                %s86 = sphi %s58, %s58
                %s87 = sphi %s51, %s51
              $region42: #{custom-call.2} parent=38 // loop_header_branch
                %84 = sbr.rel (%p82) target = $region46
              $region43: #{custom-call.2} parent=38 // loop_body
                %v88 = vld [vmem:[%s86] sm:$0xff]
                %89 = vst [vmem:[%s87] sm:$0xff] %v88
                %v90 = vld [vmem:[%s86 + $0x8] sm:$0xff]
                %91 = vst [vmem:[%s87 + $0x8] sm:$0xff] %v90
              $region44: #{custom-call.2} parent=38 // loop_footer
                %s85 = sadd.s32 1, %s81
              $region45: #{custom-call.2} parent=38 // loop_footer_branch
                %80 = sbr.rel target = $region41
              $region46: #{custom-call.2} parent=38 // loop_exit
                _
            $region39: #{custom-call.2} parent=23 // pred_fallthru
              _
            // Predicated region
            $region47: #{custom-call.2} parent=23 // pred_check
              _
            $region48: #{custom-call.2} parent=23 // pred_check_branch
              %93 = sbr.rel target = $region50
            $region49: #{custom-call.2} parent=23 // pred_region
              _
            $region50: #{custom-call.2} parent=23 // pred_fallthru
              _
          $region24: #{custom-call.2} parent=19 // pred_fallthru
            _
          // Predicated region
          $region25: #{custom-call.2} parent=19 // pred_check
            _
          $region26: #{custom-call.2} parent=19 // pred_check_branch
            %64 = sbr.rel target = $region28
          $region27: #{custom-call.2} parent=19 // pred_region
            loop: start=0, step=1, limit=1
            $region29: #{custom-call.2} parent=27 // loop_pre_header
              _
            $region30: #{custom-call.2} parent=27 // loop_header
              %s67 = sphi 0, %s71
              %p68 = scmp.ge.s32.totalorder %s67, 1
              %s72 = sphi %s58, %s58
              %s73 = sphi %s51, %s51
            $region31: #{custom-call.2} parent=27 // loop_header_branch
              %70 = sbr.rel (%p68) target = $region35
            $region32: #{custom-call.2} parent=27 // loop_body
              %v74 = vld [vmem:[%s72] sm:$0xff]
              %75 = vst [vmem:[%s73] sm:$0xff] %v74
              %v76 = vld [vmem:[%s72 + $0x8] sm:$0xff]
              %77 = vst [vmem:[%s73 + $0x8] sm:$0xff] %v76
            $region33: #{custom-call.2} parent=27 // loop_footer
              %s71 = sadd.s32 1, %s67
            $region34: #{custom-call.2} parent=27 // loop_footer_branch
              %66 = sbr.rel target = $region30
            $region35: #{custom-call.2} parent=27 // loop_exit
              _
          $region28: #{custom-call.2} parent=19 // pred_fallthru
            _
        $region20: #{custom-call.2} parent=15 // pred_fallthru
          _
        %94 = vnop
      $region16: #{custom-call.2} parent=5 // pred_fallthru
        _
      %p95 = scmp.le.s32.totalorder 1, %s3
      %p96 = scmp.lt.s32.totalorder %s3, 4
      %p97 = pnand %p95, %p96
      %p98 = pneg %p97
      // Predicated region
      $region51: #{custom-call.2} parent=5 // pred_check
        _
      $region52: #{custom-call.2} parent=5 // pred_check_branch
        %100 = sbr.rel (%p97) target = $region54
      $region53: #{custom-call.2} parent=5 // pred_region
        #allocation2 [shape = 'f32[10,10]{1,0}', space=vmem, size = 0x2000, scoped, tag = 'rescaled input a']
        %s101 = ssub.s32 %s3, 1
        %s102 = sand.u32 %s8, 1
        %s103 = sand.u32 %s8, 1
        %s104 = smul.addr %s103, 16
        %s105 = scalar_lea.vmem [#allocation0], %s104
        %s106 = sand.u32 %s8, 1
        %s107 = sand.u32 %s8, 1
        %s108 = smul.addr %s107, 16
        %s109 = scalar_lea.vmem [#allocation0], %s108
        %s110 = sand.u32 %s8, 1
        %s111 = sand.u32 %s8, 1
        %s112 = smul.addr %s111, 16
        %s113 = scalar_lea.vmem [#allocation1], %s112
        %v114 = vlaneseq
        %v115 = vand.u32 %v114, 127
        %vm116 = vcmp.lt.s32.totalorder %v115, 10
        %v117 = vlaneseq
        %v118 = vshrl.u32 %v117, 7
        %vm120 = vcmp.eq.s32.totalorder %v118, %v115
        %v121 = vld [vmem:[%s105] sm:$0xff]
        %v122 = vsel %vm120, %v121, 0.0
        %123 = vadd.xlane.f32.xlu0 %v122
        %v124 = vpop.xlane.xlu0 %123
        %vm125 = vcmp.ge.s32.totalorder %v118, %v115
        %vm126 = vmand %vm125, %vm116
        %v127 = vsel %vm126, %v121, 0.0
        %v128 = vrcp.pop %v124
        %v129 = vmul.f32 %v127, %v128
        %130 = vst [vmem:[#allocation2] sm:$0xff] %v129
        %s131 = scalar_lea.vmem %s105, 8 [#allocation0]
        %s132 = scalar_lea.vmem [#allocation2], 8
        %v133 = vlaneseq
        %v134 = vshrl.u32 %v133, 7
        %v135 = vadd.s32 %v134, 8
        %vm136 = vcmp.eq.s32.totalorder %v135, %v115
        %v137 = vld [vmem:[%s131] sm:$0xff]
        %v138 = vsel %vm136, %v137, 0.0
        %139 = vadd.xlane.f32.xlu0 %v138
        %v140 = vpop.xlane.xlu0 %139
        %vm141 = vcmp.ge.s32.totalorder %v135, %v115
        %vm142 = vmand %vm141, %vm116
        %v143 = vsel %vm142, %v137, 0.0
        %v144 = vrcp.pop %v140
        %v145 = vmul.f32 %v143, %v144
        %146 = vst [vmem:[%s132] sm:$0xff] %v145
        %v147 = vlaneseq
        %v148 = vand.u32 %v147, 127
        %v149 = vlaneseq
        %v150 = vshrl.u32 %v149, 7
        %vm152 = vcmp.eq.s32.totalorder %v148, %v150
        %v153 = vlaneseq
        %v154 = vand.u32 %v153, 127
        %vm155 = vcmp.eq.s32.totalorder %v154, 0
        %v156 = vsel %vm155, 1.0, -1.0
        %v157 = vsel %vm152, %v156, 0.0
        %v158 = vlaneseq
        %v159 = vand.u32 %v158, 127
        %v160 = vlaneseq
        %v161 = vshrl.u32 %v160, 7
        %v162 = vadd.s32 %v161, 8
        %vm163 = vcmp.eq.s32.totalorder %v159, %v162
        %v164 = vsel %vm163, -1.0, 0.0
        %s165 = scalar_lea.vmem [#allocation2], 1
        %v166 = vld [vmem:[%s165] ss:$0 sm:$0xff]
        %v167 = vxor.u32 %v166, 2147483648
        %v168 = vlaneseq
        %v169 = vand.u32 %v168, 127
        %vm170 = vcmp.eq.s32.totalorder %v169, 1
        %v171 = vmul.f32 %v167, %v157
        %172 = vadd.xlane.f32.xlu0 %v171
        %v173 = vpop.xlane.xlu0 %172
        %v174 = vsel %vm170, %v173, %v157
        %s175 = scalar_lea.vmem [#allocation2], 2
        %v176 = vld [vmem:[%s175] ss:$0 sm:$0xff]
        %v177 = vxor.u32 %v176, 2147483648
        %v178 = vlaneseq
        %v179 = vand.u32 %v178, 127
        %vm180 = vcmp.eq.s32.totalorder %v179, 2
        %v181 = vmul.f32 %v177, %v174
        %182 = vadd.xlane.f32.xlu0 %v181
        %v183 = vpop.xlane.xlu0 %182
        %v184 = vsel %vm180, %v183, %v174
        %s185 = scalar_lea.vmem [#allocation2], 3
        %v186 = vld [vmem:[%s185] ss:$0 sm:$0xff]
        %v187 = vxor.u32 %v186, 2147483648
        %v188 = vlaneseq
        %v189 = vand.u32 %v188, 127
        %vm190 = vcmp.eq.s32.totalorder %v189, 3
        %v191 = vmul.f32 %v187, %v184
        %192 = vadd.xlane.f32.xlu0 %v191
        %v193 = vpop.xlane.xlu0 %192
        %v194 = vsel %vm190, %v193, %v184
        %s195 = scalar_lea.vmem [#allocation2], 4
        %v196 = vld [vmem:[%s195] ss:$0 sm:$0xff]
        %v197 = vxor.u32 %v196, 2147483648
        %v198 = vlaneseq
        %v199 = vand.u32 %v198, 127
        %vm200 = vcmp.eq.s32.totalorder %v199, 4
        %v201 = vmul.f32 %v197, %v194
        %202 = vadd.xlane.f32.xlu0 %v201
        %v203 = vpop.xlane.xlu0 %202
        %v204 = vsel %vm200, %v203, %v194
        %s205 = scalar_lea.vmem [#allocation2], 5
        %v206 = vld [vmem:[%s205] ss:$0 sm:$0xff]
        %v207 = vxor.u32 %v206, 2147483648
        %v208 = vlaneseq
        %v209 = vand.u32 %v208, 127
        %vm210 = vcmp.eq.s32.totalorder %v209, 5
        %v211 = vmul.f32 %v207, %v204
        %212 = vadd.xlane.f32.xlu0 %v211
        %v213 = vpop.xlane.xlu0 %212
        %v214 = vsel %vm210, %v213, %v204
        %s215 = scalar_lea.vmem [#allocation2], 6
        %v216 = vld [vmem:[%s215] ss:$0 sm:$0xff]
        %v217 = vxor.u32 %v216, 2147483648
        %v218 = vlaneseq
        %v219 = vand.u32 %v218, 127
        %vm220 = vcmp.eq.s32.totalorder %v219, 6
        %v221 = vmul.f32 %v217, %v214
        %222 = vadd.xlane.f32.xlu0 %v221
        %v223 = vpop.xlane.xlu0 %222
        %v224 = vsel %vm220, %v223, %v214
        %s225 = scalar_lea.vmem [#allocation2], 7
        %v226 = vld [vmem:[%s225] ss:$0 sm:$0xff]
        %v227 = vxor.u32 %v226, 2147483648
        %v228 = vlaneseq
        %v229 = vand.u32 %v228, 127
        %vm230 = vcmp.eq.s32.totalorder %v229, 7
        %v231 = vmul.f32 %v227, %v224
        %232 = vadd.xlane.f32.xlu0 %v231
        %v233 = vpop.xlane.xlu0 %232
        %v234 = vsel %vm230, %v233, %v224
        %s235 = scalar_lea.vmem [#allocation2], 8
        %v236 = vld [vmem:[%s235] ss:$0 sm:$0xff]
        %v237 = vxor.u32 %v236, 2147483648
        %v238 = vlaneseq
        %v239 = vand.u32 %v238, 127
        %vm240 = vcmp.eq.s32.totalorder %v239, 8
        %v241 = vmul.f32 %v237, %v234
        %242 = vadd.xlane.f32.xlu0 %v241
        %v243 = vpop.xlane.xlu0 %242
        %v244 = vsel %vm240, %v243, %v234
        %v245 = vmul.f32 %v237, %v164
        %246 = vadd.xlane.f32.xlu0 %v245
        %v247 = vpop.xlane.xlu0 %246
        %v248 = vsel %vm240, %v247, %v164
        %s249 = scalar_lea.vmem [#allocation2], 9
        %v250 = vld [vmem:[%s249] ss:$0 sm:$0xff]
        %v251 = vxor.u32 %v250, 2147483648
        %v252 = vlaneseq
        %v253 = vand.u32 %v252, 127
        %vm254 = vcmp.eq.s32.totalorder %v253, 9
        %v255 = vmul.f32 %v251, %v244
        %256 = vadd.xlane.f32.xlu0 %v255
        %v257 = vpop.xlane.xlu0 %256
        %v258 = vsel %vm254, %v257, %v244
        %v259 = vmul.f32 %v251, %v248
        %260 = vadd.xlane.f32.xlu0 %v259
        %v261 = vpop.xlane.xlu0 %260
        %v262 = vsel %vm254, %v261, %v248
        %v263 = vrcp.pop %v124
        %v264 = vmul.f32 %v258, %v263
        %vm265 = vweird.f32 %v124
        %v266 = vsel %vm265, %v258, %v264
        %267 = vst [vmem:[%s113] sm:$0xff] %v266
        %v268 = vrcp.pop %v140
        %v269 = vmul.f32 %v262, %v268
        %vm270 = vweird.f32 %v140
        %v271 = vsel %vm270, %v262, %v269
        %s272 = scalar_lea.vmem %s113, 8 [#allocation1]
        %273 = vst [vmem:[%s272] sm:$0xff] %v271
        %s274 = sand.u32 %s8, 1
        %s275 = sand.u32 %s8, 1
        %s276 = smul.addr %s275, 16
        %s277 = scalar_lea.vmem [#allocation1], %s276
        %s278 = sadd.s32 %s17, %s16
        %s279 = smul.addr %s15, 2
        %s280 = sadd.s32 %s278, %s279
        %s281 = smul.addr %s14, 2
        %s282 = sadd.s32 %s280, %s281
        %s283 = smul.addr %s282, 8
        %s284 = scalar_lea.vmem %s1, %s283
        // Predicated region
        $region55: #{custom-call.2} parent=53 // pred_check
          _
        $region56: #{custom-call.2} parent=53 // pred_check_branch
          %286 = sbr.rel (0) target = $region58
        $region57: #{custom-call.2} parent=53 // pred_region
          // Predicated region
          $region59: #{custom-call.2} parent=57 // pred_check
            _
          $region60: #{custom-call.2} parent=57 // pred_check_branch
            %288 = sbr.rel (0) target = $region62
          $region61: #{custom-call.2} parent=57 // pred_region
            // Predicated region
            $region74: #{custom-call.2} parent=61 // pred_check
              _
            $region75: #{custom-call.2} parent=61 // pred_check_branch
              %305 = sbr.rel (0) target = $region77
            $region76: #{custom-call.2} parent=61 // pred_region
              loop: start=0, step=1, limit=1
              $region78: #{custom-call.2} parent=76 // loop_pre_header
                _
              $region79: #{custom-call.2} parent=76 // loop_header
                %s307 = sphi 0, %s311
                %p308 = scmp.ge.s32.totalorder %s307, 1
                %s312 = sphi %s277, %s277
                %s313 = sphi %s284, %s284
              $region80: #{custom-call.2} parent=76 // loop_header_branch
                %310 = sbr.rel (%p308) target = $region84
              $region81: #{custom-call.2} parent=76 // loop_body
                %v314 = vld [vmem:[%s312] sm:$0xff]
                %315 = vst [vmem:[%s313] sm:$0xff] %v314
                %v316 = vld [vmem:[%s312 + $0x8] sm:$0xff]
                %317 = vst [vmem:[%s313 + $0x8] sm:$0xff] %v316
              $region82: #{custom-call.2} parent=76 // loop_footer
                %s311 = sadd.s32 1, %s307
              $region83: #{custom-call.2} parent=76 // loop_footer_branch
                %306 = sbr.rel target = $region79
              $region84: #{custom-call.2} parent=76 // loop_exit
                _
            $region77: #{custom-call.2} parent=61 // pred_fallthru
              _
            // Predicated region
            $region85: #{custom-call.2} parent=61 // pred_check
              _
            $region86: #{custom-call.2} parent=61 // pred_check_branch
              %319 = sbr.rel target = $region88
            $region87: #{custom-call.2} parent=61 // pred_region
              _
            $region88: #{custom-call.2} parent=61 // pred_fallthru
              _
          $region62: #{custom-call.2} parent=57 // pred_fallthru
            _
          // Predicated region
          $region63: #{custom-call.2} parent=57 // pred_check
            _
          $region64: #{custom-call.2} parent=57 // pred_check_branch
            %290 = sbr.rel target = $region66
          $region65: #{custom-call.2} parent=57 // pred_region
            loop: start=0, step=1, limit=1
            $region67: #{custom-call.2} parent=65 // loop_pre_header
              _
            $region68: #{custom-call.2} parent=65 // loop_header
              %s293 = sphi 0, %s297
              %p294 = scmp.ge.s32.totalorder %s293, 1
              %s298 = sphi %s277, %s277
              %s299 = sphi %s284, %s284
            $region69: #{custom-call.2} parent=65 // loop_header_branch
              %296 = sbr.rel (%p294) target = $region73
            $region70: #{custom-call.2} parent=65 // loop_body
              %v300 = vld [vmem:[%s298] sm:$0xff]
              %301 = vst [vmem:[%s299] sm:$0xff] %v300
              %v302 = vld [vmem:[%s298 + $0x8] sm:$0xff]
              %303 = vst [vmem:[%s299 + $0x8] sm:$0xff] %v302
            $region71: #{custom-call.2} parent=65 // loop_footer
              %s297 = sadd.s32 1, %s293
            $region72: #{custom-call.2} parent=65 // loop_footer_branch
              %292 = sbr.rel target = $region68
            $region73: #{custom-call.2} parent=65 // loop_exit
              _
          $region66: #{custom-call.2} parent=57 // pred_fallthru
            _
        $region58: #{custom-call.2} parent=53 // pred_fallthru
          _
        %320 = vnop
      $region54: #{custom-call.2} parent=5 // pred_fallthru
        _
      %p321 = scmp.le.s32.totalorder 2, %s3
      // Predicated region
      $region89: #{custom-call.2} parent=5 // pred_check
        %p322 = pneg %p321
      $region90: #{custom-call.2} parent=5 // pred_check_branch
        %324 = sbr.rel (%p322) target = $region92
      $region91: #{custom-call.2} parent=5 // pred_region
        %s325 = ssub.s32 %s3, 2
        %s326 = sand.u32 %s9, 1
        %s327 = sand.u32 %s9, 1
        %s328 = smul.addr %s327, 16
        %s329 = scalar_lea.vmem [#allocation1], %s328
      $region92: #{custom-call.2} parent=5 // pred_fallthru
        _
    $region6: #{custom-call.2} parent=1 // loop_footer
      %s7 = sadd.s32 1, %s3
    $region7: #{custom-call.2} parent=1 // loop_footer_branch
      %2 = sbr.rel target = $region3
    $region8: #{custom-call.2} parent=1 // loop_exit
      _

// kernel: gmm_forward.1
$region0: #{gmm_forward.1}
  #allocation0 [shape = 'u32[]', space=smem, size = 0x4, offset = 0x4, fixed_abs, tag = 'smem constant byte address 0x4 - core index']
  #allocation1 [shape = 'u32[144,128]{1,0:T(1,128)}', space=vmem, size = 0x12000, scoped, tag = 'internal scratch']
  %s0 = inlined_call_operand.vmem [shape: f32[2,8,10], index: 0, kind: input, shape index: {}]
  %s1 = inlined_call_operand.vmem [shape: f32[10,128], index: 1, kind: input, shape index: {}]
  %s2 = inlined_call_operand.vmem [shape: f32[1,128], index: 2, kind: input, shape index: {}]
  %s3 = inlined_call_operand.vmem [shape: f32[10,128], index: 3, kind: input, shape index: {}]
  %s4 = inlined_call_operand.vmem [shape: f32[128,128], index: 4, kind: input, shape index: {}]
  %s5 = inlined_call_operand.vmem [shape: f32[1,128], index: 5, kind: input, shape index: {}]
  %s6 = inlined_call_operand.vmem [shape: f32[8,3], index: 6, kind: output, shape index: {}]
  %s7 = sld [smem:[#allocation0]]
  $region34: #{gmm_forward.1} parent=0
    _
  %s9 = ssub.s32 1, %s7
  %s10 = scalar_select 0, %s9, %s7
  // Predicated region
  $region2: #{gmm_forward.1} parent=0 // pred_check
    _
  $region3: #{gmm_forward.1} parent=0 // pred_check_branch
    %12 = sbr.rel (0) target = $region5
  $region4: #{gmm_forward.1} parent=0 // pred_region
    _
  $region5: #{gmm_forward.1} parent=0 // pred_fallthru
    _
  // Predicated region
  $region6: #{gmm_forward.1} parent=0 // pred_check
    _
  $region7: #{gmm_forward.1} parent=0 // pred_check_branch
    %14 = sbr.rel (0) target = $region9
  $region8: #{gmm_forward.1} parent=0 // pred_region
    _
  $region9: #{gmm_forward.1} parent=0 // pred_fallthru
    _
  // Predicated region
  $region10: #{gmm_forward.1} parent=0 // pred_check
    _
  $region11: #{gmm_forward.1} parent=0 // pred_check_branch
    %16 = sbr.rel (0) target = $region13
  $region12: #{gmm_forward.1} parent=0 // pred_region
    _
  $region13: #{gmm_forward.1} parent=0 // pred_fallthru
    _
  // Predicated region
  $region14: #{gmm_forward.1} parent=0 // pred_check
    _
  $region15: #{gmm_forward.1} parent=0 // pred_check_branch
    %18 = sbr.rel (0) target = $region17
  $region16: #{gmm_forward.1} parent=0 // pred_region
    _
  $region17: #{gmm_forward.1} parent=0 // pred_fallthru
    _
  // Predicated region
  $region18: #{gmm_forward.1} parent=0 // pred_check
    _
  $region19: #{gmm_forward.1} parent=0 // pred_check_branch
    %20 = sbr.rel (0) target = $region21
  $region20: #{gmm_forward.1} parent=0 // pred_region
    _
  $region21: #{gmm_forward.1} parent=0 // pred_fallthru
    _
  // Predicated region
  $region22: #{gmm_forward.1} parent=0 // pred_check
    _
  $region23: #{gmm_forward.1} parent=0 // pred_check_branch
    %22 = sbr.rel (0) target = $region25
  $region24: #{gmm_forward.1} parent=0 // pred_region
    _
  $region25: #{gmm_forward.1} parent=0 // pred_fallthru
    _
  %v23 = vld [vmem:[%s0] sm:$0xff]
  %s24 = scalar_lea.vmem %s0, 8
  %v25 = vld [vmem:[%s24] sm:$0xff]
  %v26 = vmul.f32 %v25, %v25
  %v27 = vld [vmem:[%s3] sm:$0xff]
  %v28 = vld [vmem:[%s3 + $0x8] sm:$0x3]
  %v29 = vld [vmem:[%s2] sm:$0x1]
  %v30 = vld [vmem:[%s1] sm:$0xff]
  %v31 = vld [vmem:[%s1 + $0x8] sm:$0x3]
  %vm32 = vcmask 80896
  %v34 = vsel %vm32, %v23, 0
  %vm36 = vcmask 1041408
  %v38 = vsel %vm36, %v31, 0
  %40 = vmatprep.subr.mxu0 0.0
  %41 = vmatpush1.msra.mxu0 %v30
  %42 = vmatprep.subr.mxu0 0.0
  %43 = vmatpush1.msra.mxu0 %v38
  %44 = vmatprep.subr.mxu0 0.0
  %45 = vmatpush1.msra.mxu0 0.0
  %46 = vmatprep.subr.mxu0 0.0
  %47 = vmatpush1.msra.mxu0 0.0
  %48 = vmatprep.subr.mxu0 0.0
  %49 = vmatpush1.msra.mxu0 0.0
  %50 = vmatprep.subr.mxu0 0.0
  %51 = vmatpush1.msra.mxu0 0.0
  %52 = vmatprep.subr.mxu0 0.0
  %53 = vmatpush1.msra.mxu0 0.0
  %54 = vmatprep.subr.mxu0 0.0
  %55 = vmatpush1.msra.mxu0 0.0
  %56 = vmatprep.subr.mxu0 0.0
  %57 = vmatpush1.msra.mxu0 0.0
  %58 = vmatprep.subr.mxu0 0.0
  %59 = vmatpush1.msra.mxu0 0.0
  %60 = vmatprep.subr.mxu0 0.0
  %61 = vmatpush1.msra.mxu0 0.0
  %62 = vmatprep.subr.mxu0 0.0
  %63 = vmatpush1.msra.mxu0 0.0
  %64 = vmatprep.subr.mxu0 0.0
  %65 = vmatpush1.msra.mxu0 0.0
  %66 = vmatprep.subr.mxu0 0.0
  %67 = vmatpush1.msra.mxu0 0.0
  %68 = vmatprep.subr.mxu0 0.0
  %69 = vmatpush1.msra.mxu0 0.0
  %70 = vmatprep.subr.mxu0 0.0
  %71 = vmatpush1.msra.mxu0 0.0
  %72 = vmatprep.subr.mxu0 0.0
  %73 = vmatpush1.msra.mxu0 0.0
  %74 = vmatprep.subr.mxu0 0.0
  %75 = vmatpush1.msra.mxu0 0.0
  %76 = vmatprep.subr.mxu0 0.0
  %77 = vmatpush1.msra.mxu0 0.0
  %78 = vmatprep.subr.mxu0 0.0
  %79 = vmatpush1.msra.mxu0 0.0
  %80 = vmatprep.subr.mxu0 0.0
  %81 = vmatpush1.msra.mxu0 0.0
  %82 = vmatprep.subr.mxu0 0.0
  %83 = vmatpush1.msra.mxu0 0.0
  %84 = vmatprep.subr.mxu0 0.0
  %85 = vmatpush1.msra.mxu0 0.0
  %86 = vmatprep.subr.mxu0 0.0
  %87 = vmatpush1.msra.mxu0 0.0
  %88 = vmatprep.subr.mxu0 0.0
  %89 = vmatpush1.msra.mxu0 0.0
  %90 = vmatprep.subr.mxu0 0.0
  %91 = vmatpush1.msra.mxu0 0.0
  %92 = vmatprep.subr.mxu0 0.0
  %93 = vmatpush1.msra.mxu0 0.0
  %94 = vmatprep.subr.mxu0 0.0
  %95 = vmatpush1.msra.mxu0 0.0
  %96 = vmatprep.subr.mxu0 0.0
  %97 = vmatpush1.msra.mxu0 0.0
  %98 = vmatprep.subr.mxu0 0.0
  %99 = vmatpush1.msra.mxu0 0.0
  %100 = vmatprep.subr.mxu0 0.0
  %101 = vmatpush1.msra.mxu0 0.0
  %102 = vmatprep.subr.mxu0 0.0
  %103 = vmatpush1.msra.mxu0 0.0
  %104 = vmatprep.mubr.f32.mxu0 0.0
  %105 = vmatmul.mubr.f32.gmra.mrb[0].mxu0 %v34
  %v106 = vpop.f32.mrb[0].mxu0
  %v107 = vadd.f32 0.0, %v106
  %v108 = vpop.f32.mrb[0].mxu0
  %109 = vdwg.mxu0
  %v111 = vlaneseq
  %v112 = vshrl.u32 %v111, 7
  %v113 = vsub.s32 0, %v112
  %v114 = vrot.slane %v29, %v113
  %v116 = vsub.f32 %v114, %v107
  %v117 = vmul.f32 %v116, %v116
  %v118 = vld [vmem:[%s4] sm:$0xff]
  %v119 = vld [vmem:[%s4 + $0x8] sm:$0xff]
  %v120 = vld [vmem:[%s4 + $0x10] sm:$0xff]
  %v121 = vld [vmem:[%s4 + $0x18] sm:$0xff]
  %v122 = vld [vmem:[%s4 + $0x20] sm:$0xff]
  %v123 = vld [vmem:[%s4 + $0x28] sm:$0xff]
  %v124 = vld [vmem:[%s4 + $0x30] sm:$0xff]
  %v125 = vld [vmem:[%s4 + $0x38] sm:$0xff]
  %v126 = vld [vmem:[%s4 + $0x40] sm:$0xff]
  %v127 = vld [vmem:[%s4 + $0x48] sm:$0xff]
  %v128 = vld [vmem:[%s4 + $0x50] sm:$0xff]
  %v129 = vld [vmem:[%s4 + $0x58] sm:$0xff]
  %v130 = vld [vmem:[%s4 + $0x60] sm:$0xff]
  %v131 = vld [vmem:[%s4 + $0x68] sm:$0xff]
  %v132 = vld [vmem:[%s4 + $0x70] sm:$0xff]
  %v133 = vld [vmem:[%s4 + $0x78] sm:$0xff]
  %134 = vmatprep.subr.mxu0 0.0
  %135 = vmatpush1.msra.mxu0 %v118
  %136 = vmatprep.subr.mxu0 0.0
  %137 = vmatpush1.msra.mxu0 %v119
  %138 = vmatprep.subr.mxu0 0.0
  %139 = vmatpush1.msra.mxu0 %v120
  %140 = vmatprep.subr.mxu0 0.0
  %141 = vmatpush1.msra.mxu0 %v121
  %142 = vmatprep.subr.mxu0 0.0
  %143 = vmatpush1.msra.mxu0 %v122
  %144 = vmatprep.subr.mxu0 0.0
  %145 = vmatpush1.msra.mxu0 %v123
  %146 = vmatprep.subr.mxu0 0.0
  %147 = vmatpush1.msra.mxu0 %v124
  %148 = vmatprep.subr.mxu0 0.0
  %149 = vmatpush1.msra.mxu0 %v125
  %150 = vmatprep.subr.mxu0 0.0
  %151 = vmatpush1.msra.mxu0 %v126
  %152 = vmatprep.subr.mxu0 0.0
  %153 = vmatpush1.msra.mxu0 %v127
  %154 = vmatprep.subr.mxu0 0.0
  %155 = vmatpush1.msra.mxu0 %v128
  %156 = vmatprep.subr.mxu0 0.0
  %157 = vmatpush1.msra.mxu0 %v129
  %158 = vmatprep.subr.mxu0 0.0
  %159 = vmatpush1.msra.mxu0 %v130
  %160 = vmatprep.subr.mxu0 0.0
  %161 = vmatpush1.msra.mxu0 %v131
  %162 = vmatprep.subr.mxu0 0.0
  %163 = vmatpush1.msra.mxu0 %v132
  %164 = vmatprep.subr.mxu0 0.0
  %165 = vmatpush1.msra.mxu0 %v133
  %166 = vmatprep.subr.mxu0 0.0
  %167 = vmatpush1.msra.mxu0 0.0
  %168 = vmatprep.subr.mxu0 0.0
  %169 = vmatpush1.msra.mxu0 0.0
  %170 = vmatprep.subr.mxu0 0.0
  %171 = vmatpush1.msra.mxu0 0.0
  %172 = vmatprep.subr.mxu0 0.0
  %173 = vmatpush1.msra.mxu0 0.0
  %174 = vmatprep.subr.mxu0 0.0
  %175 = vmatpush1.msra.mxu0 0.0
  %176 = vmatprep.subr.mxu0 0.0
  %177 = vmatpush1.msra.mxu0 0.0
  %178 = vmatprep.subr.mxu0 0.0
  %179 = vmatpush1.msra.mxu0 0.0
  %180 = vmatprep.subr.mxu0 0.0
  %181 = vmatpush1.msra.mxu0 0.0
  %182 = vmatprep.subr.mxu0 0.0
  %183 = vmatpush1.msra.mxu0 0.0
  %184 = vmatprep.subr.mxu0 0.0
  %185 = vmatpush1.msra.mxu0 0.0
  %186 = vmatprep.subr.mxu0 0.0
  %187 = vmatpush1.msra.mxu0 0.0
  %188 = vmatprep.subr.mxu0 0.0
  %189 = vmatpush1.msra.mxu0 0.0
  %190 = vmatprep.subr.mxu0 0.0
  %191 = vmatpush1.msra.mxu0 0.0
  %192 = vmatprep.subr.mxu0 0.0
  %193 = vmatpush1.msra.mxu0 0.0
  %194 = vmatprep.subr.mxu0 0.0
  %195 = vmatpush1.msra.mxu0 0.0
  %196 = vmatprep.subr.mxu0 0.0
  %197 = vmatpush1.msra.mxu0 0.0
  %198 = vmatprep.mubr.f32.mxu0 0.0
  %199 = vmatmul.mubr.f32.gmra.mrb[0].mxu0 %v117
  %v200 = vpop.f32.mrb[0].mxu0
  %v201 = vadd.f32 0.0, %v200
  %v202 = vpop.f32.mrb[0].mxu0
  %203 = vdwg.mxu0
  %v205 = vsel %vm32, %v26, 0
  %v208 = vsel %vm36, %v28, 0
  %210 = vmatprep.subr.mxu0 0.0
  %211 = vmatpush1.msra.mxu0 %v27
  %212 = vmatprep.subr.mxu0 0.0
  %213 = vmatpush1.msra.mxu0 %v208
  %214 = vmatprep.subr.mxu0 0.0
  %215 = vmatpush1.msra.mxu0 0.0
  %216 = vmatprep.subr.mxu0 0.0
  %217 = vmatpush1.msra.mxu0 0.0
  %218 = vmatprep.subr.mxu0 0.0
  %219 = vmatpush1.msra.mxu0 0.0
  %220 = vmatprep.subr.mxu0 0.0
  %221 = vmatpush1.msra.mxu0 0.0
  %222 = vmatprep.subr.mxu0 0.0
  %223 = vmatpush1.msra.mxu0 0.0
  %224 = vmatprep.subr.mxu0 0.0
  %225 = vmatpush1.msra.mxu0 0.0
  %226 = vmatprep.subr.mxu0 0.0
  %227 = vmatpush1.msra.mxu0 0.0
  %228 = vmatprep.subr.mxu0 0.0
  %229 = vmatpush1.msra.mxu0 0.0
  %230 = vmatprep.subr.mxu0 0.0
  %231 = vmatpush1.msra.mxu0 0.0
  %232 = vmatprep.subr.mxu0 0.0
  %233 = vmatpush1.msra.mxu0 0.0
  %234 = vmatprep.subr.mxu0 0.0
  %235 = vmatpush1.msra.mxu0 0.0
  %236 = vmatprep.subr.mxu0 0.0
  %237 = vmatpush1.msra.mxu0 0.0
  %238 = vmatprep.subr.mxu0 0.0
  %239 = vmatpush1.msra.mxu0 0.0
  %240 = vmatprep.subr.mxu0 0.0
  %241 = vmatpush1.msra.mxu0 0.0
  %242 = vmatprep.subr.mxu0 0.0
  %243 = vmatpush1.msra.mxu0 0.0
  %244 = vmatprep.subr.mxu0 0.0
  %245 = vmatpush1.msra.mxu0 0.0
  %246 = vmatprep.subr.mxu0 0.0
  %247 = vmatpush1.msra.mxu0 0.0
  %248 = vmatprep.subr.mxu0 0.0
  %249 = vmatpush1.msra.mxu0 0.0
  %250 = vmatprep.subr.mxu0 0.0
  %251 = vmatpush1.msra.mxu0 0.0
  %252 = vmatprep.subr.mxu0 0.0
  %253 = vmatpush1.msra.mxu0 0.0
  %254 = vmatprep.subr.mxu0 0.0
  %255 = vmatpush1.msra.mxu0 0.0
  %256 = vmatprep.subr.mxu0 0.0
  %257 = vmatpush1.msra.mxu0 0.0
  %258 = vmatprep.subr.mxu0 0.0
  %259 = vmatpush1.msra.mxu0 0.0
  %260 = vmatprep.subr.mxu0 0.0
  %261 = vmatpush1.msra.mxu0 0.0
  %262 = vmatprep.subr.mxu0 0.0
  %263 = vmatpush1.msra.mxu0 0.0
  %264 = vmatprep.subr.mxu0 0.0
  %265 = vmatpush1.msra.mxu0 0.0
  %266 = vmatprep.subr.mxu0 0.0
  %267 = vmatpush1.msra.mxu0 0.0
  %268 = vmatprep.subr.mxu0 0.0
  %269 = vmatpush1.msra.mxu0 0.0
  %270 = vmatprep.subr.mxu0 0.0
  %271 = vmatpush1.msra.mxu0 0.0
  %272 = vmatprep.subr.mxu0 0.0
  %273 = vmatpush1.msra.mxu0 0.0
  %274 = vmatprep.mubr.f32.mxu0 0.0
  %275 = vmatmul.mubr.f32.gmra.mrb[0].mxu0 %v205
  %v276 = vpop.f32.mrb[0].mxu0
  %v277 = vadd.f32 %v201, %v276
  %v278 = vpop.f32.mrb[0].mxu0
  %279 = vdwg.mxu0
  %v280 = vlog2.pop %v25
  %v281 = vmul.f32 %v280, 0.6931472
  %v282 = vsel %vm32, %v281, 0.0
  %283 = vadd.xlane.f32.xlu0 %v282
  %v284 = vpop.xlane.xlu0 %283
  %v285 = vadd.f32 %v277, %v284
  %v286 = vld [vmem:[%s5] sm:$0x1]
  %v288 = vlaneseq
  %v289 = vshrl.u32 %v288, 7
  %v290 = vsub.s32 0, %v289
  %v291 = vrot.slane %v286, %v290
  %v293 = vadd.f32 %v285, %v291
  %vm294 = vcmask 23552
  %295 = vst.msk [vmem:[%s6] sm:$0xff] %vm294, %v293
  // Predicated region
  $region26: #{gmm_forward.1} parent=0 // pred_check
    _
  $region27: #{gmm_forward.1} parent=0 // pred_check_branch
    %297 = sbr.rel (0) target = $region29
  $region28: #{gmm_forward.1} parent=0 // pred_region
    _
  $region29: #{gmm_forward.1} parent=0 // pred_fallthru
    _
  // Predicated region
  $region30: #{gmm_forward.1} parent=0 // pred_check
    _
  $region31: #{gmm_forward.1} parent=0 // pred_check_branch
    %299 = sbr.rel (0) target = $region33
  $region32: #{gmm_forward.1} parent=0 // pred_region
    _
  $region33: #{gmm_forward.1} parent=0 // pred_fallthru
    _

</llo_original>
